<compile_context>
chip_gen: v7x
topology: tpu7x:2x2x1
jax: 0.10.0
libtpu: 0.0.40
codegen_flags: <defaults>
</compile_context>

<pallas_src>
import functools

import jax
import jax.numpy as jnp
from jax.experimental import pallas as pl
from jax.experimental.pallas import tpu as pltpu


def _hinge_kernel(margin, rank_scale, batch, tile_b, pos_ref, neg_ref, out_ref):
    """One batch tile -> one f32 partial loss sum.

    pos_ref: (TB, 1) native dtype VMEM
    neg_ref: (TB, N) native dtype VMEM
    out_ref: (1, 1)  f32 SMEM  (per-block partial sum)
    """
    pos = pos_ref[...].astype(jnp.float32)                      # (TB, 1)
    neg = neg_ref[...].astype(jnp.float32)                      # (TB, N)

    max_neg = jnp.max(neg, axis=-1, keepdims=True)              # (TB, 1) XLU
    loss = jnp.maximum(max_neg - pos + margin, 0.0)             # (TB, 1) VPU

    if rank_scale is not None:
        # Per-row impostor count; mean_j * num_items folded into rank_scale.
        imp_count = jnp.sum(
            (neg - pos + margin > 0.0).astype(jnp.float32),
            axis=-1, keepdims=True)                             # (TB, 1) XLU
        loss = loss * jnp.log(imp_count * rank_scale + 1.0)     # log on EUP

    # Mask rows past the true batch size (ragged last tile reads garbage).
    row = (pl.program_id(0) * tile_b
           + jax.lax.broadcasted_iota(jnp.int32, (tile_b, 1), 0))
    loss = jnp.where(row < batch, loss, 0.0)

    out_ref[0, 0] = jnp.sum(loss)


def _choose_tile_b(B, N, itemsize):
    """Batch-tile size: ~4 MiB of neg_score per buffer, sublane-aligned."""
    target_bytes = 4 * 1024 * 1024
    tb = max(8, target_bytes // max(1, N * itemsize))
    tb = min(tb, B)
    if tb < B:
        # Align to 32 rows so sub-32-bit dtypes (bf16/i8/fp8) stay tileable.
        tb = max(8, (tb // 32) * 32) if tb >= 32 else max(8, (tb // 8) * 8)
    return tb


def hinge_loss(label, pos_score, log_pos_prob, neg_score, neg_prob,
               *, margin=2.0, num_items=None):
    """Pallas implementation of HingeLoss.forward. Returns a scalar (f32)."""
    del label, log_pos_prob, neg_prob  # unused by the loss

    B = pos_score.shape[0]
    N = neg_score.shape[-1]
    # Native dtype all the way to the kernel — no f32 copy in HBM.
    pos2 = pos_score.reshape(B, 1)
    neg2 = neg_score.reshape(B, N)

    itemsize = jnp.dtype(neg2.dtype).itemsize
    tile_b = _choose_tile_b(B, N, itemsize)
    num_blocks = pl.cdiv(B, tile_b)

    rank_scale = None if num_items is None else float(num_items) / float(N)
    kernel = functools.partial(_hinge_kernel, float(margin), rank_scale,
                               B, tile_b)

    cost = pl.CostEstimate(
        flops=4 * B * N,
        transcendentals=(0 if num_items is None else B),
        bytes_accessed=(B * N + B) * itemsize + num_blocks * 4,
    )

    partials = pl.pallas_call(
        kernel,
        out_shape=jax.ShapeDtypeStruct((num_blocks, 1), jnp.float32),
        grid=(num_blocks,),
        in_specs=[
            pl.BlockSpec((tile_b, 1), lambda i: (i, 0)),   # pos_score column
            pl.BlockSpec((tile_b, N), lambda i: (i, 0)),   # neg_score tile
        ],
        out_specs=pl.BlockSpec((1, 1), lambda i: (i, 0),
                               memory_space=pltpu.SMEM),
        compiler_params=pltpu.CompilerParams(
            dimension_semantics=("parallel",),
            vmem_limit_bytes=32 * 1024 * 1024,
        ),
        cost_estimate=cost,
    )(pos2, neg2)

    # Tiny epilogue: sum the per-block partials and take the batch mean.
    return jnp.sum(partials) / jnp.float32(B)


def _reference(pos_score, neg_score, margin, num_items):
    pos = pos_score.astype(jnp.float32)
    neg = neg_score.astype(jnp.float32)
    loss = jnp.maximum(jnp.max(neg, axis=-1) - pos + margin, 0.0)
    if num_items is None:
        return jnp.mean(loss)
    impostors = (neg - pos[:, None] + margin > 0.0).astype(jnp.float32)
    rank = jnp.mean(impostors, axis=-1) * num_items
    return jnp.mean(loss * jnp.log(rank + 1.0))


if __name__ == "__main__":
    # Small shapes: batch B=8, number of sampled negatives N=128.
    B, N = 8, 128
    MARGIN = 2.0
    NUM_ITEMS = 1000

    key = jax.random.PRNGKey(0)
    k1, k2, k3, k4, k5 = jax.random.split(key, 5)
    label = jax.random.randint(k1, (B,), 0, NUM_ITEMS)
    pos_score = jax.random.normal(k2, (B,), dtype=jnp.float32)
    log_pos_prob = jax.random.normal(k3, (B,), dtype=jnp.float32)
    neg_score = jax.random.normal(k4, (B, N), dtype=jnp.float32)
    neg_prob = jax.nn.softmax(
        jax.random.normal(k5, (B, N), dtype=jnp.float32), axis=-1)

    # Branch 1: num_items is None  (HingeLoss(margin=2))
    out_none = hinge_loss(label, pos_score, log_pos_prob, neg_score, neg_prob,
                          margin=MARGIN, num_items=None)
    out_none = jax.block_until_ready(out_none)
    ref_none = _reference(pos_score, neg_score, MARGIN, None)
    assert jnp.allclose(out_none, ref_none, rtol=1e-5, atol=1e-5), (out_none, ref_none)

    # Branch 2: num_items given  (HingeLoss(margin=2, num_items=1000))
    out_items = hinge_loss(label, pos_score, log_pos_prob, neg_score, neg_prob,
                           margin=MARGIN, num_items=NUM_ITEMS)
    out_items = jax.block_until_ready(out_items)
    ref_items = _reference(pos_score, neg_score, MARGIN, NUM_ITEMS)
    assert jnp.allclose(out_items, ref_items, rtol=1e-5, atol=1e-5), (out_items, ref_items)

    # Branch 3: bf16 inputs go through the kernel in native dtype (no wrapper cast).
    out_bf16 = hinge_loss(label, pos_score.astype(jnp.bfloat16), log_pos_prob,
                          neg_score.astype(jnp.bfloat16), neg_prob,
                          margin=MARGIN, num_items=NUM_ITEMS)
    out_bf16 = jax.block_until_ready(out_bf16)
    assert jnp.allclose(out_bf16, ref_items, rtol=2e-2, atol=2e-2), (out_bf16, ref_items)

    print("KERNEL_OK")
</pallas_src>

<mosaic_0001>
module attributes {stable_mosaic.version = 11 : i64} {
  func.func @_hinge_kernel(%arg0: i32, %arg1: memref<8x1xf32, #tpu.memory_space<vmem>>, %arg2: memref<8x128xf32, #tpu.memory_space<vmem>>, %arg3: memref<1x1xf32, #tpu.memory_space<smem>>) attributes {dimension_semantics = [#tpu.dimension_semantics<parallel>], iteration_bounds = array<i64: 1>, scalar_prefetch = 0 : i64, scratch_operands = 0 : i64, tpu.core_type = #tpu.core_type<tc>, window_params = [{transform_indices = @transform_0, window_bounds = array<i64: 8, 1>}, {transform_indices = @transform_1, window_bounds = array<i64: 8, 128>}, {transform_indices = @transform_2, window_bounds = array<i64: 1, 1>}]} {
    %c0 = arith.constant 0 : index
    %c0_0 = arith.constant 0 : index
    %0 = vector.load %arg1[%c0, %c0_0] : memref<8x1xf32, #tpu.memory_space<vmem>>, vector<8x1xf32>
    %c0_1 = arith.constant 0 : index
    %c0_2 = arith.constant 0 : index
    %1 = vector.load %arg2[%c0_1, %c0_2] : memref<8x128xf32, #tpu.memory_space<vmem>>, vector<8x128xf32>
    %cst = arith.constant dense<0xFF800000> : vector<8xf32>
    %2 = vector.multi_reduction <maximumf>, %1, %cst [1] : vector<8x128xf32> to vector<8xf32>
    %3 = vector.shape_cast %2 : vector<8xf32> to vector<8x1xf32>
    %4 = arith.subf %3, %0 : vector<8x1xf32>
    %cst_3 = arith.constant 2.000000e+00 : f32
    %5 = vector.broadcast %cst_3 : f32 to vector<8x1xf32>
    %6 = arith.addf %4, %5 : vector<8x1xf32>
    %cst_4 = arith.constant 0.000000e+00 : f32
    %7 = vector.broadcast %cst_4 : f32 to vector<8x1xf32>
    %8 = arith.maximumf %6, %7 : vector<8x1xf32>
    %c8_i32 = arith.constant 8 : i32
    %9 = arith.muli %arg0, %c8_i32 : i32
    %10 = tpu.iota {dimensions = array<i32: 0>} : vector<8x1xi32>
    %11 = vector.broadcast %9 : i32 to vector<8x1xi32>
    %12 = arith.addi %11, %10 : vector<8x1xi32>
    %c8_i32_5 = arith.constant 8 : i32
    %13 = vector.broadcast %c8_i32_5 : i32 to vector<8x1xi32>
    %14 = arith.cmpi slt, %12, %13 : vector<8x1xi32>
    %cst_6 = arith.constant 0.000000e+00 : f32
    %15 = vector.broadcast %cst_6 : f32 to vector<8x1xf32>
    %16 = arith.select %14, %8, %15 : vector<8x1xi1>, vector<8x1xf32>
    %17 = vector.shape_cast %16 : vector<8x1xf32> to vector<1x8x1xf32>
    %cst_7 = arith.constant dense<0.000000e+00> : vector<1xf32>
    %18 = vector.multi_reduction <add>, %17, %cst_7 [1, 2] : vector<1x8x1xf32> to vector<1xf32>
    %19 = vector.shape_cast %18 : vector<1xf32> to vector<1x1x1xf32>
    %20 = vector.extract %19[0, 0, 0] : f32 from vector<1x1x1xf32>
    %c0_8 = arith.constant 0 : index
    %c0_9 = arith.constant 0 : index
    %21 = memref.load %arg3[%c0_8, %c0_9] : memref<1x1xf32, #tpu.memory_space<smem>>
    memref.store %20, %arg3[%c0_8, %c0_9] : memref<1x1xf32, #tpu.memory_space<smem>>
    return
  }
  func.func @transform_0(%arg0: i32) -> (i32, i32) {
    %c0_i32 = arith.constant 0 : i32
    %c0_i32_0 = arith.constant 0 : i32
    return %arg0, %c0_i32 : i32, i32
  }
  func.func @transform_1(%arg0: i32) -> (i32, i32) {
    %c0_i32 = arith.constant 0 : i32
    %c0_i32_0 = arith.constant 0 : i32
    return %arg0, %c0_i32 : i32, i32
  }
  func.func @transform_2(%arg0: i32) -> (i32, i32) {
    %c0_i32 = arith.constant 0 : i32
    %c0_i32_0 = arith.constant 0 : i32
    return %arg0, %c0_i32 : i32, i32
  }
}

</mosaic_0001>

<llo_original>
// kernel: tpu_custom_call.1
$region0: #{tpu_custom_call.1}
  #allocation0 [shape = 'u32[]', space=smem, size = 0x4, offset = 0x4, fixed_abs, tag = 'smem constant byte address 0x4 - core index']
  #allocation1 [shape = 'u32[144,128]{1,0:T(1,128)}', space=vmem, size = 0x12000, scoped, tag = 'internal scratch']
  %s0 = inlined_call_operand.vmem [shape: f32[8,1], index: 0, kind: input, shape index: {}]
  %s1 = inlined_call_operand.vmem [shape: f32[8,128], index: 1, kind: input, shape index: {}]
  %s2 = inlined_call_operand.hbm [shape: f32[1,1], index: 2, kind: output, shape index: {}]
  %s3 = sld [smem:[#allocation0]]
  $region18: #{tpu_custom_call.1} parent=0
    _
  %s5 = ssub.s32 1, %s3
  %s6 = scalar_select 0, %s5, %s3
  $region1: #{tpu_custom_call.1} parent=0
    #allocation2 [shape = 'u8[512]{0}', space=smem, size = 0x200, scoped, tag = 'output window, operand 0, single buffered']
    #allocation3 [shape = 's32[1]{0}', space=sflag, size = 0x4, scoped, tag = 'scoped memory for tpu_custom_call.1']
    %7 = vsyncpa [#allocation3], 0
    // Predicated region
    $region2: #{tpu_custom_call.1} parent=1 // pred_check
      _
    $region3: #{tpu_custom_call.1} parent=1 // pred_check_branch
      %9 = sbr.rel (0) target = $region5
    $region4: #{tpu_custom_call.1} parent=1 // pred_region
      _
    $region5: #{tpu_custom_call.1} parent=1 // pred_fallthru
      _
    // Predicated region
    $region6: #{tpu_custom_call.1} parent=1 // pred_check
      _
    $region7: #{tpu_custom_call.1} parent=1 // pred_check_branch
      %11 = sbr.rel (0) target = $region9
    $region8: #{tpu_custom_call.1} parent=1 // pred_region
      _
    $region9: #{tpu_custom_call.1} parent=1 // pred_fallthru
      _
    %v12 = vld [vmem:[%s0] sm:$0xff]
    %v13 = vld [vmem:[%s1] sm:$0xff]
    %14 = vmax.xlane.f32.xlu0 %v13
    %v15 = vpop.xlane.xlu0 %14
    %v16 = vsub.f32 %v15, %v12
    %v17 = vadd.f32 %v16, 2.0
    %v18 = vmax.f32 %v17, 0.0
    %s19 = smul.u32 0, 8
    %v20 = vlaneseq
    %v21 = vshrl.u32 %v20, 7
    %v22 = vstv %s19
    %v23 = vadd.s32 %v22, %v21
    %vm24 = vcmp.lt.s32.totalorder %v23, 8
    %v25 = vsel %vm24, %v18, 0.0
    %vm26 = vcmask 7168
    %v27 = vsel %vm26, %v25, 0.0
    %28 = vadd.xlane.f32.xlu0 %v27
    %v29 = vpop.xlane.xlu0 %28
    %v30 = vrot.slane %v29, 4
    %v31 = vadd.f32 %v29, %v30
    %v32 = vrot.slane %v31, 2
    %v33 = vadd.f32 %v31, %v32
    %v34 = vrot.slane %v33, 1
    %v35 = vadd.f32 %v33, %v34
    %s36 = vtos %v35
    %s37 = scalar_lea.smem [#allocation2], 0
    %38 = sst [smem:[%s37]] %s36
    // Predicated region
    $region10: #{tpu_custom_call.1} parent=1 // pred_check
      _
    $region11: #{tpu_custom_call.1} parent=1 // pred_check_branch
      %40 = sbr.rel (0) target = $region13
    $region12: #{tpu_custom_call.1} parent=1 // pred_region
      %s42 = ssub.s32 16, 16
      %43 = vsyncadd [#allocation3], %s42
      %46 = dma.smem_to_hbm [#allocation2], 16, %s2, [#allocation3]
    $region13: #{tpu_custom_call.1} parent=1 // pred_fallthru
      _
    // Predicated region
    $region14: #{tpu_custom_call.1} parent=1 // pred_check
      _
    $region15: #{tpu_custom_call.1} parent=1 // pred_check_branch
      %48 = sbr.rel (0) target = $region17
    $region16: #{tpu_custom_call.1} parent=1 // pred_region
      %49 = dma.done [#allocation3], 16
    $region17: #{tpu_custom_call.1} parent=1 // pred_fallthru
      _
    %50 = sfence
    %51 = vsyncpa [#allocation3], 1

</llo_original>
